<compile_context>
chip_gen: v7x
topology: tpu7x:2x2x1
jax: 0.10.0
libtpu: 0.0.40
codegen_flags: <defaults>
</compile_context>

<pallas_src>
import math

import jax
import jax.numpy as jnp
from jax.experimental import pallas as pl
from jax.experimental.pallas import tpu as pltpu


# ----------------------------------------------------------------------------
# Parameter setup (glue): faithful port of log2d() from the PyTorch source,
# including its (x2 + y2 / 2 * s2) operator precedence.
# ----------------------------------------------------------------------------
def log2d_jax(k: int, sigma):
    sigma = jnp.asarray(sigma, jnp.float32)
    ax = jnp.round(
        jnp.linspace(-math.floor(k / 2), math.floor(k / 2), k)
    ).astype(jnp.float32)
    y = jnp.repeat(ax.reshape(-1, 1), k, axis=1)   # ax.view(-1,1).repeat(1,k)
    x = jnp.repeat(ax.reshape(1, -1), k, axis=0)   # ax.view(1,-1).repeat(k,1)
    x2 = x ** 2
    y2 = y ** 2
    s2 = sigma ** 2
    s4 = sigma ** 4
    hg = jnp.exp(-(x2 + y2) / (2.0 * s2))
    # NB: (x2 + y2 / 2 * s2) == x2 + (y2/2)*s2, exactly as in the PyTorch source.
    kernel_t = hg * (1.0 - (x2 + y2 / 2 * s2)) * (1.0 / s4 * jnp.sum(hg))
    kernel = kernel_t - jnp.sum(kernel_t) / float(k) ** 2
    return kernel  # (k, k) float32


def _largest_divisor_leq(n: int, limit: int) -> int:
    limit = max(1, min(n, limit))
    for d in range(limit, 0, -1):
        if n % d == 0:
            return d
    return 1


def _vmem_budgets():
    """Generation-aware VMEM budgets (v5e/v6e: 128 MiB physical, v7x: 64 MiB)."""
    try:
        cap = int(pltpu.get_tpu_info().vmem_capacity_bytes)
    except Exception:
        cap = 64 << 20                      # conservative default (v7x per-TC VMEM)
    if cap >= (96 << 20):                   # v5e / v6e
        vmem_limit = 96 << 20
        conv_budget = 48 << 20
        rescale_blk = 4 << 20
    else:                                   # v7x
        vmem_limit = 44 << 20
        conv_budget = 22 << 20
        rescale_blk = 2 << 20
    return vmem_limit, conv_budget, rescale_blk


# ----------------------------------------------------------------------------
# Pass 1: in-kernel zero halo + LoG conv (alpha folded into weights),
#         U_pre = x + alpha*B, plus per-tile max|alpha*B| and max(x).
# ----------------------------------------------------------------------------
def _make_conv_stats_kernel(K: int, H: int, W: int, p: int, nt: int):
    Hp, Wp = H + 2 * p, W + 2 * p

    def kernel(w_ref, x_ref, u_ref, maxb_ref, maxin_ref, pad_ref):
        xv = x_ref[...]                                    # (nt, H, W) f32

        # In-kernel zero halo: zero only the borders of the padded scratch; the
        # interior is fully overwritten below.  Done every grid step so it is
        # correct no matter how the "parallel" axis is split across TensorCores.
        if p > 0:
            pad_ref[:, 0:p, :] = jnp.zeros((nt, p, Wp), jnp.float32)
            pad_ref[:, H + p:Hp, :] = jnp.zeros((nt, p, Wp), jnp.float32)
            pad_ref[:, :, 0:p] = jnp.zeros((nt, Hp, p), jnp.float32)
            pad_ref[:, :, W + p:Wp] = jnp.zeros((nt, Hp, p), jnp.float32)
        pad_ref[:, p:p + H, p:p + W] = xv
        xpv = pad_ref[...]                                 # (nt, Hp, Wp)

        # Hoist the K*K scalar weights (SMEM reads) out of the MAC loop.
        ws = [w_ref[t] for t in range(K * K)]

        # Cross-correlation (PyTorch conv2d semantics); alpha is pre-folded into
        # the weights, so acc == alpha * B.
        acc = ws[0] * xpv[:, 0:H, 0:W]
        for t in range(1, K * K):
            i, j = divmod(t, K)
            acc = acc + ws[t] * xpv[:, i:i + H, j:j + W]
        # TODO(synk): replace the K*K unaligned slices with pltpu.roll (XLU), and
        # for W >= 128 express the W-direction conv as banded MXU matmuls.

        u_ref[...] = xv + acc                              # x + alpha*B

        # Per-tile partial reductions (phase 1 of the two-phase global max).
        maxb_ref[...] = jnp.full(maxb_ref.shape, jnp.max(jnp.abs(acc)), jnp.float32)
        maxin_ref[...] = jnp.full(maxin_ref.shape, jnp.max(xv), jnp.float32)

    return kernel


# ----------------------------------------------------------------------------
# Pass 2: single fused rescale by a precomputed scalar.
# ----------------------------------------------------------------------------
def _scale_kernel(s_ref, u_ref, o_ref):
    o_ref[...] = u_ref[...] * s_ref[0]


def _rescale(src, scale_arr, H, W, blk_bytes, budget, vmem_limit):
    """out = src * scale, with lane-dense (rows, 128) blocks when possible."""
    N = src.shape[0]
    total = N * H * W
    cparams = pltpu.CompilerParams(dimension_semantics=("parallel",),
                                   vmem_limit_bytes=vmem_limit)

    if total % 128 == 0:
        R = total // 128
        rt_limit = max(8, blk_bytes // (128 * 4))
        rt = 0
        if R % 8 == 0:
            # largest divisor of R that is a multiple of 8 and within budget
            for d in range(min(R, rt_limit), 7, -1):
                if R % d == 0 and d % 8 == 0:
                    rt = d
                    break
        elif R * 128 * 4 * 3 <= budget:
            rt = R                           # full extent is always a legal block
        if rt:
            u2 = src.reshape(R, 128)         # free bitcast (contiguous layout)
            out2 = pl.pallas_call(
                _scale_kernel,
                out_shape=jax.ShapeDtypeStruct((R, 128), jnp.float32),
                grid=(R // rt,),
                in_specs=[
                    pl.BlockSpec(memory_space=pltpu.MemorySpace.SMEM),   # scale (1,)
                    pl.BlockSpec((rt, 128), lambda r: (r, 0)),
                ],
                out_specs=pl.BlockSpec((rt, 128), lambda r: (r, 0)),
                compiler_params=cparams,
            )(scale_arr, u2)
            return out2.reshape(N, H, W)

    # Bounded plane-tiled fallback (replaces the old single-full-block fallback).
    # TODO(synk): H-tile here (and in pass 1) for planes too large for VMEM.
    nr_limit = max(1, budget // (6 * H * W * 4))
    if N >= 2:
        nr_limit = min(nr_limit, N // 2)
    nr = _largest_divisor_leq(N, nr_limit)
    return pl.pallas_call(
        _scale_kernel,
        out_shape=jax.ShapeDtypeStruct((N, H, W), jnp.float32),
        grid=(N // nr,),
        in_specs=[
            pl.BlockSpec(memory_space=pltpu.MemorySpace.SMEM),
            pl.BlockSpec((nr, H, W), lambda r: (r, 0, 0)),
        ],
        out_specs=pl.BlockSpec((nr, H, W), lambda r: (r, 0, 0)),
        compiler_params=cparams,
    )(scale_arr, src)


def usm_forward(x, kernel_size: int, sigma: float, alpha: float,
                stride: int = 1, dilation: int = 1):
    """USMBase.forward:  B = LoG-conv(x);  U = (x + alpha*B) * max(x) / max(|B|)."""
    if stride != 1 or dilation != 1:
        # TODO(synk): stride/dilation != 1 change the conv output size and the
        # PyTorch .view() reinterpretation; not supported by this kernel.
        raise NotImplementedError("usm_forward supports stride=1, dilation=1 only")

    x = x.astype(jnp.float32)
    Bn, C, H, W = x.shape
    K = kernel_size
    # padding formula from USMBase.__init__ (in_channels == C)
    padding = int((stride * (C - 1) + (K - 1) * (dilation - 1) + K - C) / 2)
    if 2 * padding != K - 1:
        raise NotImplementedError("usm_forward requires odd kernel_size "
                                  "(same-size conv output)")
    p = padding
    Hp, Wp = H + 2 * p, W + 2 * p

    vmem_limit, conv_budget, rescale_blk = _vmem_budgets()

    # Parameter setup (glue): LoG weights with alpha folded in (saves a VALU
    # multiply per element in the kernel).  alpha == 0 handled unfolded.
    w = log2d_jax(K, sigma).reshape(-1).astype(jnp.float32)       # (K*K,)
    folded = (alpha != 0.0)
    w_conv = (w * jnp.float32(alpha)) if folded else w

    # Fold B*C into one "plane" axis; each plane's conv is independent so the
    # grid can tile it with no halo exchange.
    N = Bn * C
    xf = x.reshape(N, H, W)

    # Plane tiling: biggest nt within the generation-aware budget, while keeping
    # T >= 4 (and even) so both v7x TensorCores get >= 2 double-buffered steps.
    bytes_per_plane = 4 * (Hp * Wp + (K * K + 6) * H * W)
    nt_limit = max(1, conv_budget // bytes_per_plane)
    if N >= 4:
        nt_limit = min(nt_limit, N // 4)
    elif N >= 2:
        nt_limit = min(nt_limit, N // 2)
    nt = _largest_divisor_leq(N, nt_limit)
    T = N // nt

    conv_kernel = _make_conv_stats_kernel(K, H, W, p, nt)
    u_pre, maxb, maxin = pl.pallas_call(
        conv_kernel,
        out_shape=(
            jax.ShapeDtypeStruct((N, H, W), jnp.float32),      # U_pre = x + alpha*B
            jax.ShapeDtypeStruct((T, 1, 128), jnp.float32),    # per-tile max|alpha*B|
            jax.ShapeDtypeStruct((T, 1, 128), jnp.float32),    # per-tile max(x)
        ),
        grid=(T,),
        in_specs=[
            pl.BlockSpec(memory_space=pltpu.MemorySpace.SMEM),   # LoG weights (K*K,)
            pl.BlockSpec((nt, H, W), lambda n: (n, 0, 0)),       # unpadded planes
        ],
        out_specs=(
            pl.BlockSpec((nt, H, W), lambda n: (n, 0, 0)),
            pl.BlockSpec((1, 1, 128), lambda n: (n, 0, 0)),
            pl.BlockSpec((1, 1, 128), lambda n: (n, 0, 0)),
        ),
        scratch_shapes=[pltpu.VMEM((nt, Hp, Wp), jnp.float32)],  # zero-halo pad buf
        compiler_params=pltpu.CompilerParams(
            dimension_semantics=("parallel",),                   # shard planes on v7x
            vmem_limit_bytes=vmem_limit),
    )(w_conv, xf)

    # Phase 2 of the global reduction (tiny, done in XLA): one scalar scale.
    maxb_g = jnp.max(maxb)
    maxin_g = jnp.max(maxin)
    if folded:
        # maxb_g == |alpha| * max|B|  =>  scale == max(x) / max|B|
        scale = maxin_g * jnp.float32(abs(alpha)) / maxb_g
        src = u_pre
    else:
        # alpha == 0: U_pre degenerates to x (kernel's u is unused), B unscaled.
        scale = maxin_g / maxb_g
        src = xf
    scale_arr = jnp.reshape(scale, (1,)).astype(jnp.float32)

    out = _rescale(src, scale_arr, H, W, rescale_blk, conv_budget, vmem_limit)
    return out.reshape(Bn, C, H, W)


# ----------------------------------------------------------------------------
# Pure-JAX reference (for a correctness check against the Pallas path).
# ----------------------------------------------------------------------------
def usm_reference(x, kernel_size, sigma, alpha):
    x = x.astype(jnp.float32)
    Bn, C, H, W = x.shape
    K = kernel_size
    p = (K - 1) // 2
    w = log2d_jax(K, sigma).reshape(1, 1, K, K)
    xr = x.reshape(Bn * C, 1, H, W)
    Bmap = jax.lax.conv_general_dilated(
        xr, w, window_strides=(1, 1), padding=[(p, p), (p, p)],
        dimension_numbers=("NCHW", "OIHW", "NCHW"))
    Bmap = Bmap.reshape(Bn, C, H, W)
    U = x + alpha * Bmap
    return U * jnp.max(x) / jnp.max(jnp.abs(Bmap))


if __name__ == "__main__":
    key = jax.random.PRNGKey(0)
    # small NCHW input consistent with USMBase(in_channels=4, kernel_size=3)
    x = jax.random.normal(key, (2, 4, 16, 16), dtype=jnp.float32)

    # deterministic "parameters": sigma would normally be uniform(1e-4, 0.9999),
    # alpha assigned via assign_weight(); fix them here.
    kernel_size = 3
    sigma = 0.5
    alpha = 2.0

    out = usm_forward(x, kernel_size, sigma, alpha)
    jax.block_until_ready(out)
    assert out.shape == x.shape and out.dtype == jnp.float32

    ref = usm_reference(x, kernel_size, sigma, alpha)
    assert bool(jnp.allclose(out, ref, rtol=1e-3, atol=1e-3)), "mismatch vs reference"

    print("KERNEL_OK")
</pallas_src>

<mosaic_0001>
module attributes {stable_mosaic.version = 11 : i64} {
  func.func @kernel(%arg0: i32, %arg1: memref<9xf32, #tpu.memory_space<smem>>, %arg2: memref<2x16x16xf32, #tpu.memory_space<vmem>>, %arg3: memref<2x16x16xf32, #tpu.memory_space<vmem>>, %arg4: memref<1x1x128xf32, #tpu.memory_space<vmem>>, %arg5: memref<1x1x128xf32, #tpu.memory_space<vmem>>, %arg6: memref<2x18x18xf32, #tpu.memory_space<vmem>>) attributes {dimension_semantics = [#tpu.dimension_semantics<parallel>], iteration_bounds = array<i64: 4>, scalar_prefetch = 0 : i64, scratch_operands = 1 : i64, tpu.core_type = #tpu.core_type<tc>, window_params = [{transform_indices = @transform_0, window_bounds = array<i64: 9>}, {transform_indices = @transform_1, window_bounds = array<i64: 2, 16, 16>}, {transform_indices = @transform_2, window_bounds = array<i64: 2, 16, 16>}, {transform_indices = @transform_3, window_bounds = array<i64: 1, 1, 128>}, {transform_indices = @transform_4, window_bounds = array<i64: 1, 1, 128>}]} {
    %c0 = arith.constant 0 : index
    %c0_0 = arith.constant 0 : index
    %c0_1 = arith.constant 0 : index
    %0 = vector.load %arg2[%c0, %c0_0, %c0_1] : memref<2x16x16xf32, #tpu.memory_space<vmem>>, vector<2x16x16xf32>
    %cst = arith.constant 0.000000e+00 : f32
    %1 = vector.broadcast %cst : f32 to vector<2x1x18xf32>
    %c0_2 = arith.constant 0 : index
    %c0_3 = arith.constant 0 : index
    %c0_4 = arith.constant 0 : index
    %2 = vector.load %arg6[%c0_2, %c0_3, %c0_4] : memref<2x18x18xf32, #tpu.memory_space<vmem>>, vector<2x1x18xf32>
    tpu.vector_store %arg6[%c0_2, %c0_3, %c0_4], %1 {strides = array<i32>} : memref<2x18x18xf32, #tpu.memory_space<vmem>>, vector<2x1x18xf32>,
    %cst_5 = arith.constant 0.000000e+00 : f32
    %3 = vector.broadcast %cst_5 : f32 to vector<2x1x18xf32>
    %c0_6 = arith.constant 0 : index
    %c17 = arith.constant 17 : index
    %c0_7 = arith.constant 0 : index
    %4 = vector.load %arg6[%c0_6, %c17, %c0_7] : memref<2x18x18xf32, #tpu.memory_space<vmem>>, vector<2x1x18xf32>
    tpu.vector_store %arg6[%c0_6, %c17, %c0_7], %3 {strides = array<i32>} : memref<2x18x18xf32, #tpu.memory_space<vmem>>, vector<2x1x18xf32>,
    %cst_8 = arith.constant 0.000000e+00 : f32
    %5 = vector.broadcast %cst_8 : f32 to vector<2x18x1xf32>
    %c0_9 = arith.constant 0 : index
    %c0_10 = arith.constant 0 : index
    %c0_11 = arith.constant 0 : index
    %6 = vector.load %arg6[%c0_9, %c0_10, %c0_11] : memref<2x18x18xf32, #tpu.memory_space<vmem>>, vector<2x18x1xf32>
    tpu.vector_store %arg6[%c0_9, %c0_10, %c0_11], %5 {strides = array<i32>} : memref<2x18x18xf32, #tpu.memory_space<vmem>>, vector<2x18x1xf32>,
    %cst_12 = arith.constant 0.000000e+00 : f32
    %7 = vector.broadcast %cst_12 : f32 to vector<2x18x1xf32>
    %c0_13 = arith.constant 0 : index
    %c0_14 = arith.constant 0 : index
    %c17_15 = arith.constant 17 : index
    %8 = vector.load %arg6[%c0_13, %c0_14, %c17_15] : memref<2x18x18xf32, #tpu.memory_space<vmem>>, vector<2x18x1xf32>
    tpu.vector_store %arg6[%c0_13, %c0_14, %c17_15], %7 {strides = array<i32>} : memref<2x18x18xf32, #tpu.memory_space<vmem>>, vector<2x18x1xf32>,
    %c0_16 = arith.constant 0 : index
    %c1 = arith.constant 1 : index
    %c1_17 = arith.constant 1 : index
    %9 = vector.load %arg6[%c0_16, %c1, %c1_17] : memref<2x18x18xf32, #tpu.memory_space<vmem>>, vector<2x16x16xf32>
    tpu.vector_store %arg6[%c0_16, %c1, %c1_17], %0 {strides = array<i32>} : memref<2x18x18xf32, #tpu.memory_space<vmem>>, vector<2x16x16xf32>,
    %c0_18 = arith.constant 0 : index
    %c0_19 = arith.constant 0 : index
    %c0_20 = arith.constant 0 : index
    %10 = vector.load %arg6[%c0_18, %c0_19, %c0_20] : memref<2x18x18xf32, #tpu.memory_space<vmem>>, vector<2x18x18xf32>
    %c0_21 = arith.constant 0 : index
    %11 = memref.load %arg1[%c0_21] : memref<9xf32, #tpu.memory_space<smem>>
    %c1_22 = arith.constant 1 : index
    %12 = memref.load %arg1[%c1_22] : memref<9xf32, #tpu.memory_space<smem>>
    %c2 = arith.constant 2 : index
    %13 = memref.load %arg1[%c2] : memref<9xf32, #tpu.memory_space<smem>>
    %c3 = arith.constant 3 : index
    %14 = memref.load %arg1[%c3] : memref<9xf32, #tpu.memory_space<smem>>
    %c4 = arith.constant 4 : index
    %15 = memref.load %arg1[%c4] : memref<9xf32, #tpu.memory_space<smem>>
    %c5 = arith.constant 5 : index
    %16 = memref.load %arg1[%c5] : memref<9xf32, #tpu.memory_space<smem>>
    %c6 = arith.constant 6 : index
    %17 = memref.load %arg1[%c6] : memref<9xf32, #tpu.memory_space<smem>>
    %c7 = arith.constant 7 : index
    %18 = memref.load %arg1[%c7] : memref<9xf32, #tpu.memory_space<smem>>
    %c8 = arith.constant 8 : index
    %19 = memref.load %arg1[%c8] : memref<9xf32, #tpu.memory_space<smem>>
    %20 = vector.extract_strided_slice %10 {offsets = [0, 0, 0], sizes = [2, 16, 16], strides = [1, 1, 1]} : vector<2x18x18xf32> to vector<2x16x16xf32>
    %21 = vector.broadcast %11 : f32 to vector<2x16x16xf32>
    %22 = arith.mulf %21, %20 : vector<2x16x16xf32>
    %23 = vector.extract_strided_slice %10 {offsets = [0, 0, 1], sizes = [2, 16, 16], strides = [1, 1, 1]} : vector<2x18x18xf32> to vector<2x16x16xf32>
    %24 = vector.broadcast %12 : f32 to vector<2x16x16xf32>
    %25 = arith.mulf %24, %23 : vector<2x16x16xf32>
    %26 = arith.addf %22, %25 : vector<2x16x16xf32>
    %27 = vector.extract_strided_slice %10 {offsets = [0, 0, 2], sizes = [2, 16, 16], strides = [1, 1, 1]} : vector<2x18x18xf32> to vector<2x16x16xf32>
    %28 = vector.broadcast %13 : f32 to vector<2x16x16xf32>
    %29 = arith.mulf %28, %27 : vector<2x16x16xf32>
    %30 = arith.addf %26, %29 : vector<2x16x16xf32>
    %31 = vector.extract_strided_slice %10 {offsets = [0, 1, 0], sizes = [2, 16, 16], strides = [1, 1, 1]} : vector<2x18x18xf32> to vector<2x16x16xf32>
    %32 = vector.broadcast %14 : f32 to vector<2x16x16xf32>
    %33 = arith.mulf %32, %31 : vector<2x16x16xf32>
    %34 = arith.addf %30, %33 : vector<2x16x16xf32>
    %35 = vector.extract_strided_slice %10 {offsets = [0, 1, 1], sizes = [2, 16, 16], strides = [1, 1, 1]} : vector<2x18x18xf32> to vector<2x16x16xf32>
    %36 = vector.broadcast %15 : f32 to vector<2x16x16xf32>
    %37 = arith.mulf %36, %35 : vector<2x16x16xf32>
    %38 = arith.addf %34, %37 : vector<2x16x16xf32>
    %39 = vector.extract_strided_slice %10 {offsets = [0, 1, 2], sizes = [2, 16, 16], strides = [1, 1, 1]} : vector<2x18x18xf32> to vector<2x16x16xf32>
    %40 = vector.broadcast %16 : f32 to vector<2x16x16xf32>
    %41 = arith.mulf %40, %39 : vector<2x16x16xf32>
    %42 = arith.addf %38, %41 : vector<2x16x16xf32>
    %43 = vector.extract_strided_slice %10 {offsets = [0, 2, 0], sizes = [2, 16, 16], strides = [1, 1, 1]} : vector<2x18x18xf32> to vector<2x16x16xf32>
    %44 = vector.broadcast %17 : f32 to vector<2x16x16xf32>
    %45 = arith.mulf %44, %43 : vector<2x16x16xf32>
    %46 = arith.addf %42, %45 : vector<2x16x16xf32>
    %47 = vector.extract_strided_slice %10 {offsets = [0, 2, 1], sizes = [2, 16, 16], strides = [1, 1, 1]} : vector<2x18x18xf32> to vector<2x16x16xf32>
    %48 = vector.broadcast %18 : f32 to vector<2x16x16xf32>
    %49 = arith.mulf %48, %47 : vector<2x16x16xf32>
    %50 = arith.addf %46, %49 : vector<2x16x16xf32>
    %51 = vector.extract_strided_slice %10 {offsets = [0, 2, 2], sizes = [2, 16, 16], strides = [1, 1, 1]} : vector<2x18x18xf32> to vector<2x16x16xf32>
    %52 = vector.broadcast %19 : f32 to vector<2x16x16xf32>
    %53 = arith.mulf %52, %51 : vector<2x16x16xf32>
    %54 = arith.addf %50, %53 : vector<2x16x16xf32>
    %55 = arith.addf %0, %54 : vector<2x16x16xf32>
    %c0_23 = arith.constant 0 : index
    %c0_24 = arith.constant 0 : index
    %c0_25 = arith.constant 0 : index
    %56 = vector.load %arg3[%c0_23, %c0_24, %c0_25] : memref<2x16x16xf32, #tpu.memory_space<vmem>>, vector<2x16x16xf32>
    tpu.vector_store %arg3[%c0_23, %c0_24, %c0_25], %55 {strides = array<i32>} : memref<2x16x16xf32, #tpu.memory_space<vmem>>, vector<2x16x16xf32>,
    %57 = math.absf %54 : vector<2x16x16xf32>
    %58 = vector.shape_cast %57 : vector<2x16x16xf32> to vector<1x2x16x16xf32>
    %cst_26 = arith.constant dense<0xFF800000> : vector<1xf32>
    %59 = vector.multi_reduction <maximumf>, %58, %cst_26 [1, 2, 3] : vector<1x2x16x16xf32> to vector<1xf32>
    %60 = vector.shape_cast %59 : vector<1xf32> to vector<1x1x1x1xf32>
    %61 = vector.extract %60[0, 0, 0, 0] : f32 from vector<1x1x1x1xf32>
    %62 = vector.broadcast %61 : f32 to vector<1x1x128xf32>
    %c0_27 = arith.constant 0 : index
    %c0_28 = arith.constant 0 : index
    %c0_29 = arith.constant 0 : index
    %63 = vector.load %arg4[%c0_27, %c0_28, %c0_29] : memref<1x1x128xf32, #tpu.memory_space<vmem>>, vector<1x1x128xf32>
    tpu.vector_store %arg4[%c0_27, %c0_28, %c0_29], %62 {strides = array<i32>} : memref<1x1x128xf32, #tpu.memory_space<vmem>>, vector<1x1x128xf32>,
    %64 = vector.shape_cast %0 : vector<2x16x16xf32> to vector<1x2x16x16xf32>
    %cst_30 = arith.constant dense<0xFF800000> : vector<1xf32>
    %65 = vector.multi_reduction <maximumf>, %64, %cst_30 [1, 2, 3] : vector<1x2x16x16xf32> to vector<1xf32>
    %66 = vector.shape_cast %65 : vector<1xf32> to vector<1x1x1x1xf32>
    %67 = vector.extract %66[0, 0, 0, 0] : f32 from vector<1x1x1x1xf32>
    %68 = vector.broadcast %67 : f32 to vector<1x1x128xf32>
    %c0_31 = arith.constant 0 : index
    %c0_32 = arith.constant 0 : index
    %c0_33 = arith.constant 0 : index
    %69 = vector.load %arg5[%c0_31, %c0_32, %c0_33] : memref<1x1x128xf32, #tpu.memory_space<vmem>>, vector<1x1x128xf32>
    tpu.vector_store %arg5[%c0_31, %c0_32, %c0_33], %68 {strides = array<i32>} : memref<1x1x128xf32, #tpu.memory_space<vmem>>, vector<1x1x128xf32>,
    return
  }
  func.func @transform_0(%arg0: i32) -> i32 {
    %c0_i32 = arith.constant 0 : i32
    %c0_i32_0 = arith.constant 0 : i32
    return %c0_i32 : i32
  }
  func.func @transform_1(%arg0: i32) -> (i32, i32, i32) {
    %c0_i32 = arith.constant 0 : i32
    %c0_i32_0 = arith.constant 0 : i32
    %c0_i32_1 = arith.constant 0 : i32
    return %arg0, %c0_i32, %c0_i32_0 : i32, i32, i32
  }
  func.func @transform_2(%arg0: i32) -> (i32, i32, i32) {
    %c0_i32 = arith.constant 0 : i32
    %c0_i32_0 = arith.constant 0 : i32
    %c0_i32_1 = arith.constant 0 : i32
    return %arg0, %c0_i32, %c0_i32_0 : i32, i32, i32
  }
  func.func @transform_3(%arg0: i32) -> (i32, i32, i32) {
    %c0_i32 = arith.constant 0 : i32
    %c0_i32_0 = arith.constant 0 : i32
    %c0_i32_1 = arith.constant 0 : i32
    return %arg0, %c0_i32, %c0_i32_0 : i32, i32, i32
  }
  func.func @transform_4(%arg0: i32) -> (i32, i32, i32) {
    %c0_i32 = arith.constant 0 : i32
    %c0_i32_0 = arith.constant 0 : i32
    %c0_i32_1 = arith.constant 0 : i32
    return %arg0, %c0_i32, %c0_i32_0 : i32, i32, i32
  }
}

</mosaic_0001>

<llo_original>
// kernel: tpu_custom_call.1
$region0: #{tpu_custom_call.1}
  #allocation0 [shape = 'u32[]', space=smem, size = 0x4, offset = 0x4, fixed_abs, tag = 'smem constant byte address 0x4 - core index']
  #allocation1 [shape = 'u32[144,128]{1,0:T(1,128)}', space=vmem, size = 0x12000, scoped, tag = 'internal scratch']
  #allocation2 [shape = 'f32[2,18,18]{2,1,0:T(8,128)}', space=vmem, size = 0x6000, scoped, tag = 'scratch operand']
  %s0 = inlined_call_operand.hbm [shape: f32[9], index: 0, kind: input, shape index: {}]
  %s1 = inlined_call_operand.hbm [shape: f32[8,16,16], index: 1, kind: input, shape index: {}]
  %s2 = inlined_call_operand.hbm [shape: f32[8,16,16], index: 2, kind: output, shape index: {0}]
  %s3 = inlined_call_operand.hbm [shape: f32[4,1,128], index: 3, kind: output, shape index: {1}]
  %s4 = inlined_call_operand.hbm [shape: f32[4,1,128], index: 4, kind: output, shape index: {2}]
  %5 = xla_tuple %s2, %s3, %s4
  %s6 = sld [smem:[#allocation0]]
  $region65: #{tpu_custom_call.1} parent=0
    _
  %s8 = ssub.s32 1, %s6
  %s9 = scalar_select 0, %s8, %s6
  $region1: #{tpu_custom_call.1} parent=0
    #allocation3 [shape = 'u8[512]{0}', space=smem, size = 0x200, scoped, tag = 'input window, operand 0, single buffered']
    #allocation4 [shape = 's32[2]{0}', space=sflag, size = 0x8, scoped, tag = 'scoped memory for tpu_custom_call.1']
    #allocation5 [shape = 's32[2]{0}', space=sflag, size = 0x8, scoped, tag = 'scoped memory for tpu_custom_call.1']
    #allocation6 [shape = 's32[2]{0}', space=sflag, size = 0x8, scoped, tag = 'scoped memory for tpu_custom_call.1']
    #allocation7 [shape = 'u8[32768]{0}', space=vmem, size = 0x8000, scoped, tag = 'input window, operand 1']
    #allocation8 [shape = 'u8[32768]{0}', space=vmem, size = 0x8000, scoped, tag = 'output window, operand 0']
    #allocation9 [shape = 'u8[1024]{0}', space=vmem, size = 0x400, scoped, tag = 'output window, operand 1']
    #allocation10 [shape = 's32[2]{0}', space=sflag, size = 0x8, scoped, tag = 'scoped memory for tpu_custom_call.1']
    #allocation11 [shape = 'u8[1024]{0}', space=vmem, size = 0x400, scoped, tag = 'output window, operand 2']
    %10 = vsyncpa [#allocation6], 0
    %11 = vsyncpa [#allocation4], 0
    %s12 = scalar_lea.sflag [#allocation4], 1
    %13 = vsyncpa %s12, 0
    %14 = vsyncpa [#allocation5], 0
    %s15 = scalar_lea.sflag [#allocation5], 1
    %16 = vsyncpa %s15, 0
    %17 = vsyncpa [#allocation10], 0
    %s18 = scalar_lea.sflag [#allocation10], 1
    %19 = vsyncpa %s18, 0
    loop: start=0, step=1, limit=6
    $region2: #{tpu_custom_call.1} parent=1 // loop_pre_header
      _
    $region3: #{tpu_custom_call.1} parent=1 // loop_header
      %s21 = sphi 0, %s25
      %p22 = scmp.ge.s32.totalorder %s21, 6
      %s29 = sphi 0, %s29
      %s31 = sphi 0, %s29
      %s32 = sphi 0, %s31
      %s46 = sphi 0, %s32
      %s52 = sphi 0, %s54
      %s55 = sphi 0, %s52
      %s56 = sphi 0, %s55
      %s72 = sphi 0, %s56
      %s78 = sphi 0, %s80
      %s81 = sphi 0, %s78
      %s82 = sphi 0, %s81
      %s98 = sphi 0, %s82
      %s104 = sphi 0, %s106
      %s107 = sphi 0, %s104
      %s108 = sphi 0, %s107
      %s124 = sphi 0, %s108
      %s130 = sphi 0, %s132
      %s133 = sphi 0, %s130
      %s134 = sphi 0, %s133
      %s150 = sphi 0, %s134
    $region4: #{tpu_custom_call.1} parent=1 // loop_header_branch
      %24 = sbr.rel (%p22) target = $region8
    $region5: #{tpu_custom_call.1} parent=1 // loop_body
      %s26 = ssub.s32 %s21, 1
      %s27 = ssub.s32 %s21, 2
      %s28 = sadd.s32 %s21, 1
      %s30 = sadd.s32 %s29, 1
      %p33 = scmp.eq.s32.totalorder %s21, 3
      %p34 = scmp.ne.s32.totalorder %s29, %s31
      %p35 = scmp.eq.s32.totalorder %s21, 0
      %p36 = por %p34, %p35
      %p37 = scmp.ne.s32.totalorder %s29, %s31
      %p38 = scmp.eq.s32.totalorder %s26, 3
      %p39 = por %p37, %p38
      %p40 = scmp.ne.s32.totalorder %s31, %s32
      %p41 = scmp.eq.s32.totalorder %s26, 0
      %p42 = por %p40, %p41
      %p43 = scmp.ne.s32.totalorder %s31, %s32
      %p44 = scmp.eq.s32.totalorder %s27, 3
      %p45 = por %p43, %p44
      %p47 = scmp.ne.s32.totalorder %s32, %s46
      %p48 = scmp.eq.s32.totalorder %s27, 0
      %p49 = por %p47, %p48
      %s50 = ssub.s32 %s21, %s28
      %p51 = scmp.eq.s32.totalorder %s50, 0
      %s53 = sadd.s32 %s52, 1
      %s54 = scalar_select %p51, %s52, %s53
      %p57 = pneg %p51
      %p58 = scmp.eq.s32.totalorder %s21, 3
      %p59 = por %p57, %p58
      %p60 = scmp.ne.s32.totalorder %s52, %s55
      %p61 = scmp.eq.s32.totalorder %s21, 0
      %p62 = por %p60, %p61
      %p63 = scmp.ne.s32.totalorder %s52, %s55
      %p64 = scmp.eq.s32.totalorder %s26, 3
      %p65 = por %p63, %p64
      %p66 = scmp.ne.s32.totalorder %s55, %s56
      %p67 = scmp.eq.s32.totalorder %s26, 0
      %p68 = por %p66, %p67
      %p69 = scmp.ne.s32.totalorder %s55, %s56
      %p70 = scmp.eq.s32.totalorder %s27, 3
      %p71 = por %p69, %p70
      %p73 = scmp.ne.s32.totalorder %s56, %s72
      %p74 = scmp.eq.s32.totalorder %s27, 0
      %p75 = por %p73, %p74
      %s76 = ssub.s32 %s21, %s28
      %p77 = scmp.eq.s32.totalorder %s76, 0
      %s79 = sadd.s32 %s78, 1
      %s80 = scalar_select %p77, %s78, %s79
      %p83 = pneg %p77
      %p84 = scmp.eq.s32.totalorder %s21, 3
      %p85 = por %p83, %p84
      %p86 = scmp.ne.s32.totalorder %s78, %s81
      %p87 = scmp.eq.s32.totalorder %s21, 0
      %p88 = por %p86, %p87
      %p89 = scmp.ne.s32.totalorder %s78, %s81
      %p90 = scmp.eq.s32.totalorder %s26, 3
      %p91 = por %p89, %p90
      %p92 = scmp.ne.s32.totalorder %s81, %s82
      %p93 = scmp.eq.s32.totalorder %s26, 0
      %p94 = por %p92, %p93
      %p95 = scmp.ne.s32.totalorder %s81, %s82
      %p96 = scmp.eq.s32.totalorder %s27, 3
      %p97 = por %p95, %p96
      %p99 = scmp.ne.s32.totalorder %s82, %s98
      %p100 = scmp.eq.s32.totalorder %s27, 0
      %p101 = por %p99, %p100
      %s102 = ssub.s32 %s21, %s28
      %p103 = scmp.eq.s32.totalorder %s102, 0
      %s105 = sadd.s32 %s104, 1
      %s106 = scalar_select %p103, %s104, %s105
      %p109 = pneg %p103
      %p110 = scmp.eq.s32.totalorder %s21, 3
      %p111 = por %p109, %p110
      %p112 = scmp.ne.s32.totalorder %s104, %s107
      %p113 = scmp.eq.s32.totalorder %s21, 0
      %p114 = por %p112, %p113
      %p115 = scmp.ne.s32.totalorder %s104, %s107
      %p116 = scmp.eq.s32.totalorder %s26, 3
      %p117 = por %p115, %p116
      %p118 = scmp.ne.s32.totalorder %s107, %s108
      %p119 = scmp.eq.s32.totalorder %s26, 0
      %p120 = por %p118, %p119
      %p121 = scmp.ne.s32.totalorder %s107, %s108
      %p122 = scmp.eq.s32.totalorder %s27, 3
      %p123 = por %p121, %p122
      %p125 = scmp.ne.s32.totalorder %s108, %s124
      %p126 = scmp.eq.s32.totalorder %s27, 0
      %p127 = por %p125, %p126
      %s128 = ssub.s32 %s21, %s28
      %p129 = scmp.eq.s32.totalorder %s128, 0
      %s131 = sadd.s32 %s130, 1
      %s132 = scalar_select %p129, %s130, %s131
      %p135 = pneg %p129
      %p136 = scmp.eq.s32.totalorder %s21, 3
      %p137 = por %p135, %p136
      %p138 = scmp.ne.s32.totalorder %s130, %s133
      %p139 = scmp.eq.s32.totalorder %s21, 0
      %p140 = por %p138, %p139
      %p141 = scmp.ne.s32.totalorder %s130, %s133
      %p142 = scmp.eq.s32.totalorder %s26, 3
      %p143 = por %p141, %p142
      %p144 = scmp.ne.s32.totalorder %s133, %s134
      %p145 = scmp.eq.s32.totalorder %s26, 0
      %p146 = por %p144, %p145
      %p147 = scmp.ne.s32.totalorder %s133, %s134
      %p148 = scmp.eq.s32.totalorder %s27, 3
      %p149 = por %p147, %p148
      %p151 = scmp.ne.s32.totalorder %s134, %s150
      %p152 = scmp.eq.s32.totalorder %s27, 0
      %p153 = por %p151, %p152
      %p154 = scmp.le.s32.totalorder 1, %s21
      %p155 = scmp.lt.s32.totalorder %s21, 5
      %p156 = pnand %p154, %p155
      %p157 = pneg %p156
      // Predicated region
      $region9: #{tpu_custom_call.1} parent=5 // pred_check
        _
      $region10: #{tpu_custom_call.1} parent=5 // pred_check_branch
        %159 = sbr.rel (%p156) target = $region12
      $region11: #{tpu_custom_call.1} parent=5 // pred_region
        %s160 = ssub.s32 %s21, 1
        // Predicated region
        $region13: #{tpu_custom_call.1} parent=11 // pred_check
          %p161 = pneg %p42
        $region14: #{tpu_custom_call.1} parent=11 // pred_check_branch
          %163 = sbr.rel (%p161) target = $region16
        $region15: #{tpu_custom_call.1} parent=11 // pred_region
          %s165 = ssub.s32 16, 16
          %166 = vsyncadd [#allocation6], %s165
          %169 = dma.hbm_to_smem %s0, 16, [#allocation3], [#allocation6]
        $region16: #{tpu_custom_call.1} parent=11 // pred_fallthru
          _
      $region12: #{tpu_custom_call.1} parent=5 // pred_fallthru
        _
      %p170 = scmp.lt.s32.totalorder %s21, 4
      // Predicated region
      $region17: #{tpu_custom_call.1} parent=5 // pred_check
        %p171 = pneg %p170
      $region18: #{tpu_custom_call.1} parent=5 // pred_check_branch
        %173 = sbr.rel (%p171) target = $region20
      $region19: #{tpu_custom_call.1} parent=5 // pred_region
        // Predicated region
        $region21: #{tpu_custom_call.1} parent=19 // pred_check
          %p174 = pneg %p62
        $region22: #{tpu_custom_call.1} parent=19 // pred_check_branch
          %176 = sbr.rel (%p174) target = $region24
        $region23: #{tpu_custom_call.1} parent=19 // pred_region
          %s177 = sand.u32 %s52, 1
          %s178 = scalar_lea.sflag [#allocation4], %s177
          %s179 = sand.u32 %s52, 1
          %s180 = smul.addr %s179, 32
          %s181 = scalar_lea.vmem [#allocation7], %s180
          %s182 = smul.u32 2, %s21
          %s184 = ssub.s32 512, 512
          %185 = vsyncadd %s178, %s184
          %s186 = smul.addr %s182, 2
          %s187 = smul.addr %s186, 128
          %s188 = scalar_lea.hbm %s1, %s187
          %s189 = sshll.u32 %s181, 4
          %s190 = int_to_ptr.vmem [resolvable:$true] %s189
          %195 = dma.hbm_to_vmem [thread:$0]  %s188, 512, %s190, %s178, 128, 128, 8
        $region24: #{tpu_custom_call.1} parent=19 // pred_fallthru
          _
      $region20: #{tpu_custom_call.1} parent=5 // pred_fallthru
        _
      %p196 = scmp.le.s32.totalorder 1, %s21
      %p197 = scmp.lt.s32.totalorder %s21, 5
      %p198 = pnand %p196, %p197
      %p199 = pneg %p198
      // Predicated region
      $region25: #{tpu_custom_call.1} parent=5 // pred_check
        _
      $region26: #{tpu_custom_call.1} parent=5 // pred_check_branch
        %201 = sbr.rel (%p198) target = $region28
      $region27: #{tpu_custom_call.1} parent=5 // pred_region
        %s202 = ssub.s32 %s21, 1
        // Predicated region
        $region29: #{tpu_custom_call.1} parent=27 // pred_check
          %p203 = pneg %p42
        $region30: #{tpu_custom_call.1} parent=27 // pred_check_branch
          %205 = sbr.rel (%p203) target = $region32
        $region31: #{tpu_custom_call.1} parent=27 // pred_region
          %206 = dma.done [#allocation6], 16
        $region32: #{tpu_custom_call.1} parent=27 // pred_fallthru
          _
        %s207 = sand.u32 %s55, 1
        %s208 = scalar_lea.sflag [#allocation4], %s207
        %s209 = sand.u32 %s55, 1
        %s210 = smul.addr %s209, 32
        %s211 = scalar_lea.vmem [#allocation7], %s210
        // Predicated region
        $region33: #{tpu_custom_call.1} parent=27 // pred_check
          %p212 = pneg %p68
        $region34: #{tpu_custom_call.1} parent=27 // pred_check_branch
          %214 = sbr.rel (%p212) target = $region36
        $region35: #{tpu_custom_call.1} parent=27 // pred_region
          %215 = dma.done %s208, 512
        $region36: #{tpu_custom_call.1} parent=27 // pred_fallthru
          _
        %216 = sfence
        %p217 = pneg %p42
        %p218 = pneg %p39
        %s219 = sand.u32 %s55, 1
        %s220 = scalar_lea.sflag [#allocation4], %s219
        %s221 = sand.u32 %s55, 1
        %s222 = smul.addr %s221, 32
        %s223 = scalar_lea.vmem [#allocation7], %s222
        %p224 = pneg %p68
        %p225 = pneg %p65
        %p226 = pneg %p94
        %p227 = pneg %p91
        %s228 = sand.u32 %s81, 1
        %s229 = scalar_lea.sflag [#allocation5], %s228
        %s230 = sand.u32 %s81, 1
        %s231 = smul.addr %s230, 32
        %s232 = scalar_lea.vmem [#allocation8], %s231
        %p233 = pneg %p120
        %p234 = pneg %p117
        %s235 = sand.u32 %s26, 1
        %s236 = scalar_lea.sflag [#allocation10], %s235
        %s237 = sand.u32 %s107, 1
        %s238 = scalar_lea.vmem [#allocation9], %s237
        %p239 = pneg %p146
        %p240 = pneg %p143
        %s241 = sand.u32 %s26, 1
        %s242 = scalar_lea.sflag [#allocation10], %s241
        %s243 = sand.u32 %s133, 1
        %s244 = scalar_lea.vmem [#allocation11], %s243
        %s245 = smul.u32 2, %s26
        %s246 = smul.u32 2, %s26
        %v247 = vld [vmem:[%s211] sm:$0xff]
        %v248 = vld [vmem:[%s211 + $0x8] sm:$0xff]
        %v249 = vld [vmem:[%s211 + $0x10] sm:$0xff]
        %v250 = vld [vmem:[%s211 + $0x18] sm:$0xff]
        %vm251 = vcmask 139264
        %252 = vst.msk [vmem:[#allocation2] sm:$0x1] %vm251, 0.0
        %253 = vst.msk [vmem:[#allocation2 + $0x18] sm:$0x1] %vm251, 0.0
        %254 = vst.msk [vmem:[#allocation2 + $0x11] sm:$0x1] %vm251, 0.0
        %255 = vst.msk [vmem:[#allocation2 + $0x29] sm:$0x1] %vm251, 0.0
        %vm256 = vcmask 7168
        %257 = vst.msk [vmem:[#allocation2] sm:$0xff] %vm256, 0.0
        %258 = vst.msk [vmem:[#allocation2 + $0x8] sm:$0xff] %vm256, 0.0
        %vm259 = vcmask 1024
        %260 = vst.msk [vmem:[#allocation2 + $0x10] sm:$0x3] %vm259, 0.0
        %261 = vst.msk [vmem:[#allocation2 + $0x18] sm:$0xff] %vm256, 0.0
        %262 = vst.msk [vmem:[#allocation2 + $0x20] sm:$0xff] %vm256, 0.0
        %263 = vst.msk [vmem:[#allocation2 + $0x28] sm:$0x3] %vm259, 0.0
        %vm264 = vcmask 146568
        %265 = vst.msk [vmem:[#allocation2] sm:$0xff] %vm264, 0.0
        %266 = vst.msk [vmem:[#allocation2 + $0x8] sm:$0xff] %vm264, 0.0
        %vm267 = vcmask 140424
        %268 = vst.msk [vmem:[#allocation2 + $0x10] sm:$0x3] %vm267, 0.0
        %269 = vst.msk [vmem:[#allocation2 + $0x18] sm:$0xff] %vm264, 0.0
        %270 = vst.msk [vmem:[#allocation2 + $0x20] sm:$0xff] %vm264, 0.0
        %271 = vst.msk [vmem:[#allocation2 + $0x28] sm:$0x3] %vm267, 0.0
        %276 = vrot.lane.b32.xlu0 %v247, 1
        %v277 = vpop.permute.xlu0 %276
        %278 = vrot.lane.b32.xlu0 %v248, 1
        %v279 = vpop.permute.xlu0 %278
        %280 = vrot.lane.b32.xlu0 %v249, 1
        %v281 = vpop.permute.xlu0 %280
        %282 = vrot.lane.b32.xlu0 %v250, 1
        %v283 = vpop.permute.xlu0 %282
        %vm288 = vcmask 138248
        %289 = vst.msk [vmem:[#allocation2 + $0x1] sm:$0xff] %vm288, %v277
        %290 = vst.msk [vmem:[#allocation2 + $0x9] sm:$0xff] %vm288, %v279
        %291 = vst.msk [vmem:[#allocation2 + $0x19] sm:$0xff] %vm288, %v281
        %292 = vst.msk [vmem:[#allocation2 + $0x21] sm:$0xff] %vm288, %v283
        %v293 = vld [vmem:[#allocation2] sm:$0xff]
        %v294 = vld [vmem:[#allocation2 + $0x8] sm:$0xff]
        %v295 = vld [vmem:[#allocation2 + $0x10] sm:$0x3]
        %v296 = vld [vmem:[#allocation2 + $0x18] sm:$0xff]
        %v297 = vld [vmem:[#allocation2 + $0x20] sm:$0xff]
        %v298 = vld [vmem:[#allocation2 + $0x28] sm:$0x3]
        %s299 = sld [smem:[#allocation3]]
        %s300 = sld [smem:[#allocation3 + $0x1]]
        %s301 = sld [smem:[#allocation3 + $0x2]]
        %s302 = sld [smem:[#allocation3 + $0x3]]
        %s303 = sld [smem:[#allocation3 + $0x4]]
        %s304 = sld [smem:[#allocation3 + $0x5]]
        %s305 = sld [smem:[#allocation3 + $0x6]]
        %s306 = sld [smem:[#allocation3 + $0x7]]
        %s307 = sld [smem:[#allocation3 + $0x8]]
        %v308 = vstv %s299
        %v309 = vmul.f32 %v308, %v293
        %v310 = vmul.f32 %v308, %v294
        %v311 = vmul.f32 %v308, %v296
        %v312 = vmul.f32 %v308, %v297
        %v313 = vstv %s300
        %v314 = vmul.f32 %v313, %v293
        %v315 = vmul.f32 %v313, %v294
        %v316 = vmul.f32 %v313, %v296
        %v317 = vmul.f32 %v313, %v297
        %322 = vrot.lane.b32.xlu0 %v314, 127
        %v323 = vpop.permute.xlu0 %322
        %324 = vrot.lane.b32.xlu0 %v315, 127
        %v325 = vpop.permute.xlu0 %324
        %326 = vrot.lane.b32.xlu0 %v316, 127
        %v327 = vpop.permute.xlu0 %326
        %328 = vrot.lane.b32.xlu0 %v317, 127
        %v329 = vpop.permute.xlu0 %328
        %v334 = vadd.f32 %v309, %v323
        %v335 = vadd.f32 %v310, %v325
        %v336 = vadd.f32 %v311, %v327
        %v337 = vadd.f32 %v312, %v329
        %v338 = vstv %s301
        %v339 = vmul.f32 %v338, %v293
        %v340 = vmul.f32 %v338, %v294
        %v341 = vmul.f32 %v338, %v296
        %v342 = vmul.f32 %v338, %v297
        %347 = vrot.lane.b32.xlu0 %v339, 126
        %v348 = vpop.permute.xlu0 %347
        %349 = vrot.lane.b32.xlu0 %v340, 126
        %v350 = vpop.permute.xlu0 %349
        %351 = vrot.lane.b32.xlu0 %v341, 126
        %v352 = vpop.permute.xlu0 %351
        %353 = vrot.lane.b32.xlu0 %v342, 126
        %v354 = vpop.permute.xlu0 %353
        %v359 = vadd.f32 %v334, %v348
        %v360 = vadd.f32 %v335, %v350
        %v361 = vadd.f32 %v336, %v352
        %v362 = vadd.f32 %v337, %v354
        %v363 = vstv %s302
        %v364 = vmul.f32 %v363, %v293
        %v365 = vmul.f32 %v363, %v294
        %v366 = vmul.f32 %v363, %v295
        %v367 = vmul.f32 %v363, %v296
        %v368 = vmul.f32 %v363, %v297
        %v369 = vmul.f32 %v363, %v298
        %vm376 = vcmask 1046528
        %v377 = vrot.slane %v364, 1
        %v378 = vrot.slane %v365, 1
        %v379 = vsel %vm376, %v377, %v378
        %v380 = vrot.slane %v366, 1
        %v381 = vsel %vm376, %v378, %v380
        %v382 = vrot.slane %v367, 1
        %v383 = vrot.slane %v368, 1
        %v384 = vsel %vm376, %v382, %v383
        %v385 = vrot.slane %v369, 1
        %v386 = vsel %vm376, %v383, %v385
        %v391 = vadd.f32 %v359, %v379
        %v392 = vadd.f32 %v360, %v381
        %v393 = vadd.f32 %v361, %v384
        %v394 = vadd.f32 %v362, %v386
        %v395 = vstv %s303
        %v396 = vmul.f32 %v395, %v293
        %v397 = vmul.f32 %v395, %v294
        %v398 = vmul.f32 %v395, %v295
        %v399 = vmul.f32 %v395, %v296
        %v400 = vmul.f32 %v395, %v297
        %v401 = vmul.f32 %v395, %v298
        %v408 = vrot.slane %v396, 1
        %v409 = vrot.slane %v397, 1
        %v410 = vsel %vm376, %v408, %v409
        %v411 = vrot.slane %v398, 1
        %v412 = vsel %vm376, %v409, %v411
        %v413 = vrot.slane %v399, 1
        %v414 = vrot.slane %v400, 1
        %v415 = vsel %vm376, %v413, %v414
        %v416 = vrot.slane %v401, 1
        %v417 = vsel %vm376, %v414, %v416
        %418 = vrot.lane.b32.xlu0 %v410, 127
        %v419 = vpop.permute.xlu0 %418
        %420 = vrot.lane.b32.xlu0 %v412, 127
        %v421 = vpop.permute.xlu0 %420
        %422 = vrot.lane.b32.xlu0 %v415, 127
        %v423 = vpop.permute.xlu0 %422
        %424 = vrot.lane.b32.xlu0 %v417, 127
        %v425 = vpop.permute.xlu0 %424
        %v430 = vadd.f32 %v391, %v419
        %v431 = vadd.f32 %v392, %v421
        %v432 = vadd.f32 %v393, %v423
        %v433 = vadd.f32 %v394, %v425
        %v434 = vstv %s304
        %v435 = vmul.f32 %v434, %v293
        %v436 = vmul.f32 %v434, %v294
        %v437 = vmul.f32 %v434, %v295
        %v438 = vmul.f32 %v434, %v296
        %v439 = vmul.f32 %v434, %v297
        %v440 = vmul.f32 %v434, %v298
        %v447 = vrot.slane %v435, 1
        %v448 = vrot.slane %v436, 1
        %v449 = vsel %vm376, %v447, %v448
        %v450 = vrot.slane %v437, 1
        %v451 = vsel %vm376, %v448, %v450
        %v452 = vrot.slane %v438, 1
        %v453 = vrot.slane %v439, 1
        %v454 = vsel %vm376, %v452, %v453
        %v455 = vrot.slane %v440, 1
        %v456 = vsel %vm376, %v453, %v455
        %457 = vrot.lane.b32.xlu0 %v449, 126
        %v458 = vpop.permute.xlu0 %457
        %459 = vrot.lane.b32.xlu0 %v451, 126
        %v460 = vpop.permute.xlu0 %459
        %461 = vrot.lane.b32.xlu0 %v454, 126
        %v462 = vpop.permute.xlu0 %461
        %463 = vrot.lane.b32.xlu0 %v456, 126
        %v464 = vpop.permute.xlu0 %463
        %v469 = vadd.f32 %v430, %v458
        %v470 = vadd.f32 %v431, %v460
        %v471 = vadd.f32 %v432, %v462
        %v472 = vadd.f32 %v433, %v464
        %v473 = vstv %s305
        %v474 = vmul.f32 %v473, %v293
        %v475 = vmul.f32 %v473, %v294
        %v476 = vmul.f32 %v473, %v295
        %v477 = vmul.f32 %v473, %v296
        %v478 = vmul.f32 %v473, %v297
        %v479 = vmul.f32 %v473, %v298
        %vm486 = vcmask 1045504
        %v487 = vrot.slane %v474, 2
        %v488 = vrot.slane %v475, 2
        %v489 = vsel %vm486, %v487, %v488
        %v490 = vrot.slane %v476, 2
        %v491 = vsel %vm486, %v488, %v490
        %v492 = vrot.slane %v477, 2
        %v493 = vrot.slane %v478, 2
        %v494 = vsel %vm486, %v492, %v493
        %v495 = vrot.slane %v479, 2
        %v496 = vsel %vm486, %v493, %v495
        %v501 = vadd.f32 %v469, %v489
        %v502 = vadd.f32 %v470, %v491
        %v503 = vadd.f32 %v471, %v494
        %v504 = vadd.f32 %v472, %v496
        %v505 = vstv %s306
        %v506 = vmul.f32 %v505, %v293
        %v507 = vmul.f32 %v505, %v294
        %v508 = vmul.f32 %v505, %v295
        %v509 = vmul.f32 %v505, %v296
        %v510 = vmul.f32 %v505, %v297
        %v511 = vmul.f32 %v505, %v298
        %v518 = vrot.slane %v506, 2
        %v519 = vrot.slane %v507, 2
        %v520 = vsel %vm486, %v518, %v519
        %v521 = vrot.slane %v508, 2
        %v522 = vsel %vm486, %v519, %v521
        %v523 = vrot.slane %v509, 2
        %v524 = vrot.slane %v510, 2
        %v525 = vsel %vm486, %v523, %v524
        %v526 = vrot.slane %v511, 2
        %v527 = vsel %vm486, %v524, %v526
        %528 = vrot.lane.b32.xlu0 %v520, 127
        %v529 = vpop.permute.xlu0 %528
        %530 = vrot.lane.b32.xlu0 %v522, 127
        %v531 = vpop.permute.xlu0 %530
        %532 = vrot.lane.b32.xlu0 %v525, 127
        %v533 = vpop.permute.xlu0 %532
        %534 = vrot.lane.b32.xlu0 %v527, 127
        %v535 = vpop.permute.xlu0 %534
        %v540 = vadd.f32 %v501, %v529
        %v541 = vadd.f32 %v502, %v531
        %v542 = vadd.f32 %v503, %v533
        %v543 = vadd.f32 %v504, %v535
        %v544 = vstv %s307
        %v545 = vmul.f32 %v544, %v293
        %v546 = vmul.f32 %v544, %v294
        %v547 = vmul.f32 %v544, %v295
        %v548 = vmul.f32 %v544, %v296
        %v549 = vmul.f32 %v544, %v297
        %v550 = vmul.f32 %v544, %v298
        %v557 = vrot.slane %v545, 2
        %v558 = vrot.slane %v546, 2
        %v559 = vsel %vm486, %v557, %v558
        %v560 = vrot.slane %v547, 2
        %v561 = vsel %vm486, %v558, %v560
        %v562 = vrot.slane %v548, 2
        %v563 = vrot.slane %v549, 2
        %v564 = vsel %vm486, %v562, %v563
        %v565 = vrot.slane %v550, 2
        %v566 = vsel %vm486, %v563, %v565
        %567 = vrot.lane.b32.xlu0 %v559, 126
        %v568 = vpop.permute.xlu0 %567
        %569 = vrot.lane.b32.xlu0 %v561, 126
        %v570 = vpop.permute.xlu0 %569
        %571 = vrot.lane.b32.xlu0 %v564, 126
        %v572 = vpop.permute.xlu0 %571
        %573 = vrot.lane.b32.xlu0 %v566, 126
        %v574 = vpop.permute.xlu0 %573
        %v579 = vadd.f32 %v540, %v568
        %v580 = vadd.f32 %v541, %v570
        %v581 = vadd.f32 %v542, %v572
        %v582 = vadd.f32 %v543, %v574
        %v583 = vadd.f32 %v247, %v579
        %v584 = vadd.f32 %v248, %v580
        %v585 = vadd.f32 %v249, %v581
        %v586 = vadd.f32 %v250, %v582
        %vm587 = vcmask 130048
        %588 = vst.msk [vmem:[%s232] sm:$0xff] %vm587, %v583
        %589 = vst.msk [vmem:[%s232 + $0x8] sm:$0xff] %vm587, %v584
        %590 = vst.msk [vmem:[%s232 + $0x10] sm:$0xff] %vm587, %v585
        %591 = vst.msk [vmem:[%s232 + $0x18] sm:$0xff] %vm587, %v586
        %v592 = vand.u32 2147483647, %v579
        %v593 = vand.u32 2147483647, %v580
        %v594 = vand.u32 2147483647, %v581
        %v595 = vand.u32 2147483647, %v582
        %v596 = vsel %vm587, %v592, -inf
        %v597 = vsel %vm587, %v593, -inf
        %v598 = vsel %vm587, %v594, -inf
        %v599 = vsel %vm587, %v595, -inf
        %v600 = vmax.f32 %v596, %v597
        %v601 = vmax.f32 %v598, %v599
        %v602 = vmax.f32 %v600, %v601
        %603 = vmax.xlane.f32.xlu0 %v602
        %v604 = vpop.xlane.xlu0 %603
        %v605 = vrot.slane %v604, 4
        %v606 = vmax.f32 %v604, %v605
        %v607 = vrot.slane %v606, 2
        %v608 = vmax.f32 %v606, %v607
        %v609 = vrot.slane %v608, 1
        %v610 = vmax.f32 %v608, %v609
        %s611 = vtos %v610
        %v612 = vstv %s611
        %613 = vst [vmem:[%s238] sm:$0x1] %v612
        %v614 = vsel %vm587, %v247, -inf
        %v615 = vsel %vm587, %v248, -inf
        %v616 = vsel %vm587, %v249, -inf
        %v617 = vsel %vm587, %v250, -inf
        %v618 = vmax.f32 %v614, %v615
        %v619 = vmax.f32 %v616, %v617
        %v620 = vmax.f32 %v618, %v619
        %621 = vmax.xlane.f32.xlu0 %v620
        %v622 = vpop.xlane.xlu0 %621
        %v623 = vrot.slane %v622, 4
        %v624 = vmax.f32 %v622, %v623
        %v625 = vrot.slane %v624, 2
        %v626 = vmax.f32 %v624, %v625
        %v627 = vrot.slane %v626, 1
        %v628 = vmax.f32 %v626, %v627
        %s629 = vtos %v628
        %v630 = vstv %s629
        %631 = vst [vmem:[%s244] sm:$0x1] %v630
        %s632 = sand.u32 %s81, 1
        %s633 = scalar_lea.sflag [#allocation5], %s632
        %s634 = sand.u32 %s81, 1
        %s635 = smul.addr %s634, 32
        %s636 = scalar_lea.vmem [#allocation8], %s635
        %s637 = sand.u32 %s26, 1
        %s638 = scalar_lea.sflag [#allocation10], %s637
        %s639 = sand.u32 %s107, 1
        %s640 = scalar_lea.vmem [#allocation9], %s639
        %s641 = sand.u32 %s26, 1
        %s642 = scalar_lea.sflag [#allocation10], %s641
        %s643 = sand.u32 %s133, 1
        %s644 = scalar_lea.vmem [#allocation11], %s643
        // Predicated region
        $region37: #{tpu_custom_call.1} parent=27 // pred_check
          %p645 = pneg %p91
        $region38: #{tpu_custom_call.1} parent=27 // pred_check_branch
          %647 = sbr.rel (%p645) target = $region40
        $region39: #{tpu_custom_call.1} parent=27 // pred_region
          %s648 = smul.u32 2, %s26
          %s650 = ssub.s32 512, 512
          %651 = vsyncadd %s633, %s650
          %s652 = smul.addr %s648, 2
          %s653 = smul.addr %s652, 128
          %s654 = scalar_lea.hbm %s2, %s653
          %s655 = sshll.u32 %s636, 4
          %s656 = int_to_ptr.vmem [resolvable:$true] %s655
          %661 = dma.vmem_to_hbm [thread:$0]  %s656, 512, %s654, %s633, 128, 128, 8
        $region40: #{tpu_custom_call.1} parent=27 // pred_fallthru
          _
        // Predicated region
        $region41: #{tpu_custom_call.1} parent=27 // pred_check
          %p662 = pneg %p117
        $region42: #{tpu_custom_call.1} parent=27 // pred_check_branch
          %664 = sbr.rel (%p662) target = $region44
        $region43: #{tpu_custom_call.1} parent=27 // pred_region
          %s666 = ssub.s32 16, 16
          %667 = vsyncadd %s638, %s666
          %s668 = smul.addr %s26, 16
          %s669 = scalar_lea.hbm %s3, %s668
          %s671 = sshll.u32 %s640, 4
          %s672 = int_to_ptr.vmem [resolvable:$true] %s671
          %674 = dma.vmem_to_hbm [thread:$0]  %s672, 16, %s669, %s638
        $region44: #{tpu_custom_call.1} parent=27 // pred_fallthru
          _
        // Predicated region
        $region45: #{tpu_custom_call.1} parent=27 // pred_check
          %p675 = pneg %p143
        $region46: #{tpu_custom_call.1} parent=27 // pred_check_branch
          %677 = sbr.rel (%p675) target = $region48
        $region47: #{tpu_custom_call.1} parent=27 // pred_region
          %s679 = ssub.s32 16, 16
          %680 = vsyncadd %s642, %s679
          %s681 = smul.addr %s26, 16
          %s682 = scalar_lea.hbm %s4, %s681
          %s684 = sshll.u32 %s644, 4
          %s685 = int_to_ptr.vmem [resolvable:$true] %s684
          %687 = dma.vmem_to_hbm [thread:$0]  %s685, 16, %s682, %s642
        $region48: #{tpu_custom_call.1} parent=27 // pred_fallthru
          _
      $region28: #{tpu_custom_call.1} parent=5 // pred_fallthru
        _
      %p688 = scmp.le.s32.totalorder 2, %s21
      // Predicated region
      $region49: #{tpu_custom_call.1} parent=5 // pred_check
        %p689 = pneg %p688
      $region50: #{tpu_custom_call.1} parent=5 // pred_check_branch
        %691 = sbr.rel (%p689) target = $region52
      $region51: #{tpu_custom_call.1} parent=5 // pred_region
        %s692 = ssub.s32 %s21, 2
        // Predicated region
        $region53: #{tpu_custom_call.1} parent=51 // pred_check
          %p693 = pneg %p97
        $region54: #{tpu_custom_call.1} parent=51 // pred_check_branch
          %695 = sbr.rel (%p693) target = $region56
        $region55: #{tpu_custom_call.1} parent=51 // pred_region
          %s696 = sand.u32 %s82, 1
          %s697 = scalar_lea.sflag [#allocation5], %s696
          %s698 = sand.u32 %s82, 1
          %s699 = smul.addr %s698, 32
          %s700 = scalar_lea.vmem [#allocation8], %s699
          %701 = dma.done %s697, 512
        $region56: #{tpu_custom_call.1} parent=51 // pred_fallthru
          _
        // Predicated region
        $region57: #{tpu_custom_call.1} parent=51 // pred_check
          %p702 = pneg %p123
        $region58: #{tpu_custom_call.1} parent=51 // pred_check_branch
          %704 = sbr.rel (%p702) target = $region60
        $region59: #{tpu_custom_call.1} parent=51 // pred_region
          %s705 = sand.u32 %s27, 1
          %s706 = scalar_lea.sflag [#allocation10], %s705
          %s707 = sand.u32 %s108, 1
          %s708 = scalar_lea.vmem [#allocation9], %s707
          %709 = dma.done %s706, 16
        $region60: #{tpu_custom_call.1} parent=51 // pred_fallthru
          _
        // Predicated region
        $region61: #{tpu_custom_call.1} parent=51 // pred_check
          %p710 = pneg %p149
        $region62: #{tpu_custom_call.1} parent=51 // pred_check_branch
          %712 = sbr.rel (%p710) target = $region64
        $region63: #{tpu_custom_call.1} parent=51 // pred_region
          %s713 = sand.u32 %s27, 1
          %s714 = scalar_lea.sflag [#allocation10], %s713
          %s715 = sand.u32 %s134, 1
          %s716 = scalar_lea.vmem [#allocation11], %s715
          %717 = dma.done %s714, 16
        $region64: #{tpu_custom_call.1} parent=51 // pred_fallthru
          _
      $region52: #{tpu_custom_call.1} parent=5 // pred_fallthru
        _
    $region6: #{tpu_custom_call.1} parent=1 // loop_footer
      %s25 = sadd.s32 1, %s21
    $region7: #{tpu_custom_call.1} parent=1 // loop_footer_branch
      %20 = sbr.rel target = $region3
    $region8: #{tpu_custom_call.1} parent=1 // loop_exit
      _
    %718 = vsyncpa [#allocation4], 1
    %s719 = scalar_lea.sflag [#allocation4], 1
    %720 = vsyncpa %s719, 1
    %721 = vsyncpa [#allocation5], 1
    %s722 = scalar_lea.sflag [#allocation5], 1
    %723 = vsyncpa %s722, 1
    %724 = vsyncpa [#allocation10], 1
    %s725 = scalar_lea.sflag [#allocation10], 1
    %726 = vsyncpa %s725, 1
    %727 = vsyncpa [#allocation6], 1
    %s728 = scalar_lea.sflag [#allocation6], 1
    %729 = vsyncpa %s728, 1

</llo_original>
